<compile_context>
chip_gen: v7x
topology: tpu7x:2x2x1
jax: 0.10.0
libtpu: 0.0.40
codegen_flags: <defaults>
</compile_context>

<pallas_src>
import jax
import jax.numpy as jnp
import numpy as np
from jax.experimental import pallas as pl
from jax.experimental.pallas import tpu as pltpu


# ----------------------------- JAX glue: deformable im2col (NHWC) -----------------------------

def deform_im2col_nhwc(x, offset, stride, pad, kh=3, kw=3, out_dtype=jnp.bfloat16):
    """torchvision.ops.deform_conv2d sampling on NHWC input.

    x:      (N, H, W, C)  (any float dtype; values gathered in x.dtype, blended in f32)
    offset: (N, 2*kh*kw, Ho, Wo)  torchvision layout, (dy,dx) interleaved per tap,
            deformable_groups=1 assumed.
    Returns patches (N*Ho*Wo, kh*kw*C) in `out_dtype` (bf16 cast fused into the gather
    epilogue so no separate whole-tensor cast pass), plus Ho, Wo.
    """
    N, H, W, C = x.shape
    K = kh * kw
    Ho = (H + 2 * pad - kh) // stride + 1
    Wo = (W + 2 * pad - kw) // stride + 1

    # Coordinate math stays in f32 regardless of x dtype (positional precision).
    off = offset.reshape(N, K, 2, Ho, Wo).astype(jnp.float32)
    off_y = off[:, :, 0].transpose(0, 2, 3, 1)            # (N, Ho, Wo, K) - small tensor
    off_x = off[:, :, 1].transpose(0, 2, 3, 1)

    ky = jnp.repeat(jnp.arange(kh), kw).astype(jnp.float32)   # (K,)
    kx = jnp.tile(jnp.arange(kw), kh).astype(jnp.float32)
    base_y = (jnp.arange(Ho) * stride - pad).astype(jnp.float32)
    base_x = (jnp.arange(Wo) * stride - pad).astype(jnp.float32)
    py = base_y[None, :, None, None] + ky[None, None, None, :] + off_y   # (N,Ho,Wo,K)
    px = base_x[None, None, :, None] + kx[None, None, None, :] + off_x

    y0 = jnp.floor(py)
    x0 = jnp.floor(px)
    wy1 = py - y0
    wy0 = 1.0 - wy1
    wx1 = px - x0
    wx0 = 1.0 - wx1

    # Fuse the 4 bilinear corners into ONE gather + weighted reduction.
    ys = jnp.stack([y0, y0, y0 + 1.0, y0 + 1.0], axis=1)          # (N,4,Ho,Wo,K)
    xs = jnp.stack([x0, x0 + 1.0, x0, x0 + 1.0], axis=1)
    wts = jnp.stack([wy0 * wx0, wy0 * wx1, wy1 * wx0, wy1 * wx1], axis=1)

    yi = ys.astype(jnp.int32)
    xi = xs.astype(jnp.int32)
    valid = (yi >= 0) & (yi < H) & (xi >= 0) & (xi < W)           # OOB -> 0 (zero padding)
    yc = jnp.clip(yi, 0, H - 1)
    xc = jnp.clip(xi, 0, W - 1)
    idx = (yc * W + xc).reshape(N, -1)                            # (N, 4*Ho*Wo*K)

    flat = x.reshape(N, H * W, C)
    vals = jax.vmap(lambda fb, ib: fb[ib])(flat, idx)             # (N, 4*Ho*Wo*K, C)
    vals = vals.reshape(N, 4, Ho, Wo, K, C).astype(jnp.float32)
    w = (wts * valid.astype(jnp.float32))[..., None]              # (N,4,Ho,Wo,K,1)
    sampled = jnp.sum(vals * w, axis=1)                           # f32 blend
    # Cast fused into this epilogue (elementwise+reduce+convert fuses under jit);
    # rows are (N,Ho,Wo), columns (tap, channel) -> no transpose of the big array.
    return sampled.astype(out_dtype).reshape(N * Ho * Wo, K * C), Ho, Wo


# ----------------------------- Pallas kernels -----------------------------

def _make_fused_matmul_bias_relu_kernel(n_inputs):
    """relu(sum_i p_i @ W_i + bias); BN scales already folded into W columns."""
    def kernel(*refs):
        ps = refs[:n_inputs]
        ws = refs[n_inputs:2 * n_inputs]
        b_ref = refs[2 * n_inputs]
        o_ref = refs[2 * n_inputs + 1]
        acc = jnp.dot(ps[0][...], ws[0][...], preferred_element_type=jnp.float32)
        for p_ref, w_ref in zip(ps[1:], ws[1:]):
            acc = acc + jnp.dot(p_ref[...], w_ref[...], preferred_element_type=jnp.float32)
        o_ref[...] = jnp.maximum(acc + b_ref[...], 0.0).astype(o_ref.dtype)
    return kernel


def _round_up(a, b):
    return (a + b - 1) // b * b


def _pick_tile(mg, desired=256):
    """Tile size (in grouped 128-lane rows) and padded grouped-row count.

    Big tiles amortize the ~0.35us/step pipeline overhead; >= 4 grid steps when the
    problem allows so both v7x TensorCores get >= 2 pipelined steps each; multiples of
    16 so bf16 LHS row-blocks fill whole sublane-packed vregs.  Even at tg=512 the
    per-buffer footprint (<= ~1.25 MiB LHS + 0.25 MiB out, double-buffered, plus the
    resident weight) is far inside v7x's 32 MiB default scoped VMEM.
    """
    if mg <= 32:                       # toy sizes: one step, block == full dim
        return mg, mg
    tile = min(desired, max(16, (mg // 4) // 16 * 16))
    return tile, _round_up(mg, tile)


def lane_dense_matmul_bias_relu(inputs, weights, bias, cout, g,
                                out_dtype=jnp.float32, desired_tg=256):
    """relu(sum_i inputs[i] @ W_i + bias) with a lane-dense (tg, g*cout) output.

    inputs:  list of (M, K_i) bf16 arrays (same M).
    weights: list of (g*K_i, g*cout) bf16 = kron(I_g, W_i_folded)   (g = 128 // cout, or 1)
    bias:    (1, g*cout) float32
    Returns (M, cout) in out_dtype.

    G = 128//cout consecutive output rows are packed into one 128-lane row by grouping
    G consecutive input rows into one grouped row (pure row-major reshape, free) and
    using the block-diagonal kron weights -> unmasked (tg, 128) stores, no in-kernel
    relayout, bf16 MXU operands with f32 accumulation and an f32 epilogue.
    """
    n_in = len(inputs)
    M = inputs[0].shape[0]
    nlanes = g * cout

    mg0 = -(-M // g)                       # grouped rows before padding
    tg, mg = _pick_tile(mg0, desired_tg)
    m_pad = mg * g

    grouped = []
    for p in inputs:
        K = p.shape[1]
        if m_pad != M:
            # TODO(synk): at production sizes choose tg | mg (or mask the remainder block)
            # so this whole-tensor pad copy disappears; it is a no-op at the demo shapes.
            p = jnp.pad(p, ((0, m_pad - M), (0, 0)))
        grouped.append(p.reshape(mg, g * K))   # row-major regroup: pure reshape, free

    in_specs = [pl.BlockSpec((tg, gp.shape[1]), lambda i: (i, 0)) for gp in grouped]
    in_specs += [pl.BlockSpec(w.shape, lambda i: (0, 0)) for w in weights]
    in_specs += [pl.BlockSpec((1, nlanes), lambda i: (0, 0))]

    out = pl.pallas_call(
        _make_fused_matmul_bias_relu_kernel(n_in),
        out_shape=jax.ShapeDtypeStruct((mg, nlanes), out_dtype),
        grid_spec=pltpu.PrefetchScalarGridSpec(
            num_scalar_prefetch=0,
            grid=(mg // tg,),
            in_specs=in_specs,
            out_specs=pl.BlockSpec((tg, nlanes), lambda i: (i, 0))),
        compiler_params=pltpu.CompilerParams(dimension_semantics=("parallel",)),
    )(*grouped, *weights, bias)

    return out.reshape(m_pad, cout)[:M]


# ----------------------------- DownsamBlock forward -----------------------------

def downsam_block_forward(x, params):
    N, Cin, H, W = x.shape
    cout = params["b1s"].shape[1]
    g = params["b1_big"].shape[1] // cout      # static (from shapes), jit-safe

    x_nhwc = jnp.transpose(x, (0, 2, 3, 1)).astype(jnp.bfloat16)   # one boundary transpose in

    # x1 = relu(bn1(conv1(x)))    [RIConv2d: deform_conv2d, stride=2, pad=1, no bias]
    patches1, Ho, Wo = deform_im2col_nhwc(x_nhwc, params["offset1"], stride=2, pad=1)
    y1_flat = lane_dense_matmul_bias_relu(
        [patches1], [params["w1_big"]], params["b1_big"], cout, g, out_dtype=jnp.bfloat16)
    y1_nhwc = y1_flat.reshape(N, Ho, Wo, cout)          # bf16 intermediate, stays NHWC

    # out = relu( bn2(conv2(x1)) + bn0(conv1x1_stride2(x)) )
    # -> two dots into one f32 accumulator inside a single Pallas kernel (no HBM concat).
    patches2, _, _ = deform_im2col_nhwc(y1_nhwc, params["offset2"], stride=1, pad=1)
    xs = x_nhwc[:, ::2, ::2, :][:, :Ho, :Wo, :].reshape(N * Ho * Wo, Cin)   # already bf16
    out_flat = lane_dense_matmul_bias_relu(
        [patches2, xs], [params["w2_big"], params["wc_big"]], params["bt_big"],
        cout, g, out_dtype=jnp.float32)

    return jnp.transpose(out_flat.reshape(N, Ho, Wo, cout), (0, 3, 1, 2))   # boundary transpose out


def reference_forward(x, params):
    """Pure-JAX reference: same precision flow (bf16 patches / bf16 y1, f32 accumulation),
    plain un-grouped dots, no kron packing, no Pallas."""
    N, Cin, H, W = x.shape
    cout = params["b1s"].shape[1]
    x_nhwc = jnp.transpose(x, (0, 2, 3, 1)).astype(jnp.bfloat16)

    patches1, Ho, Wo = deform_im2col_nhwc(x_nhwc, params["offset1"], stride=2, pad=1)
    y1 = jnp.maximum(
        jnp.dot(patches1, params["w1_mat"].astype(jnp.bfloat16),
                preferred_element_type=jnp.float32) + params["b1s"], 0.0)
    y1_nhwc = y1.astype(jnp.bfloat16).reshape(N, Ho, Wo, cout)

    patches2, _, _ = deform_im2col_nhwc(y1_nhwc, params["offset2"], stride=1, pad=1)
    xs = x_nhwc[:, ::2, ::2, :][:, :Ho, :Wo, :].reshape(N * Ho * Wo, Cin)
    out = jnp.maximum(
        jnp.dot(patches2, params["w2_mat"].astype(jnp.bfloat16), preferred_element_type=jnp.float32)
        + jnp.dot(xs, params["wc_mat"].astype(jnp.bfloat16), preferred_element_type=jnp.float32)
        + params["bts"], 0.0)
    return jnp.transpose(out.reshape(N, Ho, Wo, cout), (0, 3, 1, 2))


# ----------------------------- Parameter init -----------------------------

def _fold_bn(key, c, eps=1e-5):
    # Eval-mode BatchNorm folded into per-channel scale/shift.
    k1, k2, k3, k4 = jax.random.split(key, 4)
    gamma = 1.0 + 0.1 * jax.random.normal(k1, (c,), jnp.float32)
    beta = 0.1 * jax.random.normal(k2, (c,), jnp.float32)
    mean = 0.1 * jax.random.normal(k3, (c,), jnp.float32)
    var = jax.random.uniform(k4, (c,), jnp.float32, minval=0.5, maxval=1.5)
    scale = gamma / jnp.sqrt(var + eps)
    shift = beta - mean * scale
    return scale.reshape(1, c), shift.reshape(1, c)


def init_params(key, n, cin, cout, h, w):
    ho, wo = h // 2, w // 2
    ks = jax.random.split(key, 8)
    # Conv weights in PyTorch layout (Cout, Cin, kh, kw)
    w1 = 0.1 * jax.random.normal(ks[0], (cout, cin, 3, 3), jnp.float32)
    w2 = 0.1 * jax.random.normal(ks[1], (cout, cout, 3, 3), jnp.float32)
    wc = 0.1 * jax.random.normal(ks[2], (cout, cin, 1, 1), jnp.float32)
    s1, b1 = _fold_bn(ks[3], cout)
    s2, b2 = _fold_bn(ks[4], cout)
    s0, b0 = _fold_bn(ks[5], cout)
    # TODO(synk): gen_coord_3 (rotation-invariant coordinate offsets) is not defined in the
    # provided source; deterministic small offsets stand in for its output buffer.
    # Assumes deformable_groups=1 and torchvision's (dy,dx)-interleaved per-tap layout.
    offset1 = 0.5 * jax.random.normal(ks[6], (n, 2 * 9, ho, wo), jnp.float32)
    offset2 = 0.5 * jax.random.normal(ks[7], (n, 2 * 9, ho, wo), jnp.float32)

    # Matmul weights with columns matching (tap, channel)-ordered patches; BN scale folded in.
    w1_mat = jnp.transpose(w1, (2, 3, 1, 0)).reshape(9 * cin, cout) * s1        # (9*cin, cout)
    w2_mat = jnp.transpose(w2, (2, 3, 1, 0)).reshape(9 * cout, cout) * s2       # (9*cout, cout)
    wc_mat = wc.reshape(cout, cin).T * s0                                       # (cin, cout)
    b1s = b1                                                                    # (1, cout)
    bts = b2 + b0                                                               # merged tail bias

    # Lane-dense packing: block-diagonal kron(I_g, W) so g consecutive output rows
    # fill all 128 lanes of one stored row (g = 128 // cout when it divides).
    g = 128 // cout if 128 % cout == 0 else 1

    def lane_dense_w(wm):
        return jnp.kron(jnp.eye(g, dtype=wm.dtype), wm).astype(jnp.bfloat16)    # (g*K, g*cout)

    def lane_dense_b(bias):
        return jnp.tile(bias, (1, g)).astype(jnp.float32)                       # (1, g*cout)

    return dict(
        # reference path
        w1_mat=w1_mat, w2_mat=w2_mat, wc_mat=wc_mat, b1s=b1s, bts=bts,
        # Pallas path (BN-folded, lane-dense, bf16 MXU operands)
        w1_big=lane_dense_w(w1_mat), b1_big=lane_dense_b(b1s),
        w2_big=lane_dense_w(w2_mat), wc_big=lane_dense_w(wc_mat), bt_big=lane_dense_b(bts),
        offset1=offset1, offset2=offset2,
    )


# ----------------------------- main -----------------------------

if __name__ == "__main__":
    N, Cin, Cout, H, W = 2, 4, 8, 16, 16
    key = jax.random.PRNGKey(0)
    kx, kp = jax.random.split(key)
    x = jax.random.normal(kx, (N, Cin, H, W), jnp.float32)
    params = init_params(kp, N, Cin, Cout, H, W)

    out = jax.block_until_ready(jax.jit(downsam_block_forward)(x, params))
    ref = jax.block_until_ready(jax.jit(reference_forward)(x, params))

    assert out.shape == (N, Cout, H // 2, W // 2), out.shape
    # bf16 y1 intermediate + grouped-K MXU accumulation order -> allow a slightly looser
    # tolerance than pure-f32 would need; both paths share the same precision flow.
    np.testing.assert_allclose(np.asarray(out), np.asarray(ref), rtol=2e-3, atol=2e-3)
    print("KERNEL_OK")
</pallas_src>

<mosaic_0001>
module attributes {stable_mosaic.version = 11 : i64} {
  func.func @kernel(%arg0: i32, %arg1: memref<8x576xbf16, #tpu.memory_space<vmem>>, %arg2: memref<576x128xbf16, #tpu.memory_space<vmem>>, %arg3: memref<1x128xf32, #tpu.memory_space<vmem>>, %arg4: memref<8x128xbf16, #tpu.memory_space<vmem>>) attributes {dimension_semantics = [#tpu.dimension_semantics<parallel>], iteration_bounds = array<i64: 1>, scalar_prefetch = 0 : i64, scratch_operands = 0 : i64, tpu.core_type = #tpu.core_type<tc>, window_params = [{transform_indices = @transform_0, window_bounds = array<i64: 8, 576>}, {pipeline_mode = #tpu.pipeline_mode<synchronous>, transform_indices = @transform_1, window_bounds = array<i64: 576, 128>}, {pipeline_mode = #tpu.pipeline_mode<synchronous>, transform_indices = @transform_2, window_bounds = array<i64: 1, 128>}, {transform_indices = @transform_3, window_bounds = array<i64: 8, 128>}]} {
    %c0 = arith.constant 0 : index
    %c0_0 = arith.constant 0 : index
    %0 = vector.load %arg1[%c0, %c0_0] : memref<8x576xbf16, #tpu.memory_space<vmem>>, vector<8x576xbf16>
    %c0_1 = arith.constant 0 : index
    %c0_2 = arith.constant 0 : index
    %1 = vector.load %arg2[%c0_1, %c0_2] : memref<576x128xbf16, #tpu.memory_space<vmem>>, vector<576x128xbf16>
    %cst = arith.constant dense<0.000000e+00> : vector<8x128xf32>
    %2 = tpu.matmul %0, %1, %cst {dimension_numbers = #tpu.dot_dimension_numbers<[1], [0], [0], [1], [0, 0, 1, 1], [], []>} : vector<8x576xbf16>, vector<576x128xbf16>, vector<8x128xf32> -> vector<8x128xf32>
    %c0_3 = arith.constant 0 : index
    %c0_4 = arith.constant 0 : index
    %3 = vector.load %arg3[%c0_3, %c0_4] : memref<1x128xf32, #tpu.memory_space<vmem>>, vector<1x128xf32>
    %4 = vector.broadcast %3 : vector<1x128xf32> to vector<8x128xf32>
    %5 = arith.addf %2, %4 : vector<8x128xf32>
    %cst_5 = arith.constant 0.000000e+00 : f32
    %6 = vector.broadcast %cst_5 : f32 to vector<8x128xf32>
    %7 = arith.maximumf %5, %6 : vector<8x128xf32>
    %8 = arith.truncf %7 : vector<8x128xf32> to vector<8x128xbf16>
    %c0_6 = arith.constant 0 : index
    %c0_7 = arith.constant 0 : index
    %9 = vector.load %arg4[%c0_6, %c0_7] : memref<8x128xbf16, #tpu.memory_space<vmem>>, vector<8x128xbf16>
    tpu.vector_store %arg4[%c0_6, %c0_7], %8 {strides = array<i32>} : memref<8x128xbf16, #tpu.memory_space<vmem>>, vector<8x128xbf16>,
    return
  }
  func.func @transform_0(%arg0: i32) -> (i32, i32) {
    %c0_i32 = arith.constant 0 : i32
    %c0_i32_0 = arith.constant 0 : i32
    return %arg0, %c0_i32 : i32, i32
  }
  func.func @transform_1(%arg0: i32) -> (i32, i32) {
    %c0_i32 = arith.constant 0 : i32
    %c0_i32_0 = arith.constant 0 : i32
    %c0_i32_1 = arith.constant 0 : i32
    return %c0_i32, %c0_i32_0 : i32, i32
  }
  func.func @transform_2(%arg0: i32) -> (i32, i32) {
    %c0_i32 = arith.constant 0 : i32
    %c0_i32_0 = arith.constant 0 : i32
    %c0_i32_1 = arith.constant 0 : i32
    return %c0_i32, %c0_i32_0 : i32, i32
  }
  func.func @transform_3(%arg0: i32) -> (i32, i32) {
    %c0_i32 = arith.constant 0 : i32
    %c0_i32_0 = arith.constant 0 : i32
    return %arg0, %c0_i32 : i32, i32
  }
}

module attributes {stable_mosaic.version = 11 : i64} {
  func.func @kernel(%arg0: i32, %arg1: memref<8x1152xbf16, #tpu.memory_space<vmem>>, %arg2: memref<8x64xbf16, #tpu.memory_space<vmem>>, %arg3: memref<1152x128xbf16, #tpu.memory_space<vmem>>, %arg4: memref<64x128xbf16, #tpu.memory_space<vmem>>, %arg5: memref<1x128xf32, #tpu.memory_space<vmem>>, %arg6: memref<8x128xf32, #tpu.memory_space<vmem>>) attributes {dimension_semantics = [#tpu.dimension_semantics<parallel>], iteration_bounds = array<i64: 1>, scalar_prefetch = 0 : i64, scratch_operands = 0 : i64, tpu.core_type = #tpu.core_type<tc>, window_params = [{transform_indices = @transform_0, window_bounds = array<i64: 8, 1152>}, {transform_indices = @transform_1, window_bounds = array<i64: 8, 64>}, {pipeline_mode = #tpu.pipeline_mode<synchronous>, transform_indices = @transform_2, window_bounds = array<i64: 1152, 128>}, {pipeline_mode = #tpu.pipeline_mode<synchronous>, transform_indices = @transform_3, window_bounds = array<i64: 64, 128>}, {pipeline_mode = #tpu.pipeline_mode<synchronous>, transform_indices = @transform_4, window_bounds = array<i64: 1, 128>}, {transform_indices = @transform_5, window_bounds = array<i64: 8, 128>}]} {
    %c0 = arith.constant 0 : index
    %c0_0 = arith.constant 0 : index
    %0 = vector.load %arg1[%c0, %c0_0] : memref<8x1152xbf16, #tpu.memory_space<vmem>>, vector<8x1152xbf16>
    %c0_1 = arith.constant 0 : index
    %c0_2 = arith.constant 0 : index
    %1 = vector.load %arg3[%c0_1, %c0_2] : memref<1152x128xbf16, #tpu.memory_space<vmem>>, vector<1152x128xbf16>
    %cst = arith.constant dense<0.000000e+00> : vector<8x128xf32>
    %2 = tpu.matmul %0, %1, %cst {dimension_numbers = #tpu.dot_dimension_numbers<[1], [0], [0], [1], [0, 0, 1, 1], [], []>} : vector<8x1152xbf16>, vector<1152x128xbf16>, vector<8x128xf32> -> vector<8x128xf32>
    %c0_3 = arith.constant 0 : index
    %c0_4 = arith.constant 0 : index
    %3 = vector.load %arg2[%c0_3, %c0_4] : memref<8x64xbf16, #tpu.memory_space<vmem>>, vector<8x64xbf16>
    %c0_5 = arith.constant 0 : index
    %c0_6 = arith.constant 0 : index
    %4 = vector.load %arg4[%c0_5, %c0_6] : memref<64x128xbf16, #tpu.memory_space<vmem>>, vector<64x128xbf16>
    %cst_7 = arith.constant dense<0.000000e+00> : vector<8x128xf32>
    %5 = tpu.matmul %3, %4, %cst_7 {dimension_numbers = #tpu.dot_dimension_numbers<[1], [0], [0], [1], [0, 0, 1, 1], [], []>} : vector<8x64xbf16>, vector<64x128xbf16>, vector<8x128xf32> -> vector<8x128xf32>
    %6 = arith.addf %2, %5 : vector<8x128xf32>
    %c0_8 = arith.constant 0 : index
    %c0_9 = arith.constant 0 : index
    %7 = vector.load %arg5[%c0_8, %c0_9] : memref<1x128xf32, #tpu.memory_space<vmem>>, vector<1x128xf32>
    %8 = vector.broadcast %7 : vector<1x128xf32> to vector<8x128xf32>
    %9 = arith.addf %6, %8 : vector<8x128xf32>
    %cst_10 = arith.constant 0.000000e+00 : f32
    %10 = vector.broadcast %cst_10 : f32 to vector<8x128xf32>
    %11 = arith.maximumf %9, %10 : vector<8x128xf32>
    %c0_11 = arith.constant 0 : index
    %c0_12 = arith.constant 0 : index
    %12 = vector.load %arg6[%c0_11, %c0_12] : memref<8x128xf32, #tpu.memory_space<vmem>>, vector<8x128xf32>
    tpu.vector_store %arg6[%c0_11, %c0_12], %11 {strides = array<i32>} : memref<8x128xf32, #tpu.memory_space<vmem>>, vector<8x128xf32>,
    return
  }
  func.func @transform_0(%arg0: i32) -> (i32, i32) {
    %c0_i32 = arith.constant 0 : i32
    %c0_i32_0 = arith.constant 0 : i32
    return %arg0, %c0_i32 : i32, i32
  }
  func.func @transform_1(%arg0: i32) -> (i32, i32) {
    %c0_i32 = arith.constant 0 : i32
    %c0_i32_0 = arith.constant 0 : i32
    return %arg0, %c0_i32 : i32, i32
  }
  func.func @transform_2(%arg0: i32) -> (i32, i32) {
    %c0_i32 = arith.constant 0 : i32
    %c0_i32_0 = arith.constant 0 : i32
    %c0_i32_1 = arith.constant 0 : i32
    return %c0_i32, %c0_i32_0 : i32, i32
  }
  func.func @transform_3(%arg0: i32) -> (i32, i32) {
    %c0_i32 = arith.constant 0 : i32
    %c0_i32_0 = arith.constant 0 : i32
    %c0_i32_1 = arith.constant 0 : i32
    return %c0_i32, %c0_i32_0 : i32, i32
  }
  func.func @transform_4(%arg0: i32) -> (i32, i32) {
    %c0_i32 = arith.constant 0 : i32
    %c0_i32_0 = arith.constant 0 : i32
    %c0_i32_1 = arith.constant 0 : i32
    return %c0_i32, %c0_i32_0 : i32, i32
  }
  func.func @transform_5(%arg0: i32) -> (i32, i32) {
    %c0_i32 = arith.constant 0 : i32
    %c0_i32_0 = arith.constant 0 : i32
    return %arg0, %c0_i32 : i32, i32
  }
}

</mosaic_0001>

<llo_original>
// kernel: downsam_block_forward.2
$region0: #{downsam_block_forward.2}
  #allocation0 [shape = 'u32[]', space=smem, size = 0x4, offset = 0x4, fixed_abs, tag = 'smem constant byte address 0x4 - core index']
  #allocation1 [shape = 'u32[144,128]{1,0:T(1,128)}', space=vmem, size = 0x12000, scoped, tag = 'internal scratch']
  %s0 = inlined_call_operand.vmem [shape: bf16[8,576], index: 0, kind: input, shape index: {}]
  %s1 = inlined_call_operand.vmem [shape: bf16[576,128], index: 1, kind: input, shape index: {}]
  %s2 = inlined_call_operand.vmem [shape: f32[1,128], index: 2, kind: input, shape index: {}]
  %s3 = inlined_call_operand.vmem [shape: bf16[8,128], index: 3, kind: output, shape index: {}]
  %s4 = sld [smem:[#allocation0]]
  $region22: #{downsam_block_forward.2} parent=0
    _
  %s6 = ssub.s32 1, %s4
  %s7 = scalar_select 0, %s6, %s4
  // Predicated region
  $region2: #{downsam_block_forward.2} parent=0 // pred_check
    _
  $region3: #{downsam_block_forward.2} parent=0 // pred_check_branch
    %9 = sbr.rel (0) target = $region5
  $region4: #{downsam_block_forward.2} parent=0 // pred_region
    _
  $region5: #{downsam_block_forward.2} parent=0 // pred_fallthru
    _
  // Predicated region
  $region6: #{downsam_block_forward.2} parent=0 // pred_check
    _
  $region7: #{downsam_block_forward.2} parent=0 // pred_check_branch
    %11 = sbr.rel (0) target = $region9
  $region8: #{downsam_block_forward.2} parent=0 // pred_region
    _
  $region9: #{downsam_block_forward.2} parent=0 // pred_fallthru
    _
  // Predicated region
  $region10: #{downsam_block_forward.2} parent=0 // pred_check
    _
  $region11: #{downsam_block_forward.2} parent=0 // pred_check_branch
    %13 = sbr.rel (0) target = $region13
  $region12: #{downsam_block_forward.2} parent=0 // pred_region
    _
  $region13: #{downsam_block_forward.2} parent=0 // pred_fallthru
    _
  %v15 = vld [vmem:[%s0] sm:$0xff]
  %v16 = vld [vmem:[%s0 + $0x8] sm:$0xff]
  %v17 = vld [vmem:[%s0 + $0x10] sm:$0xf]
  %v18 = vld [vmem:[%s1] sm:$0xf]
  %v19 = vld [vmem:[%s1 + $0x4] sm:$0xf]
  %v20 = vld [vmem:[%s1 + $0x8] sm:$0xf]
  %v21 = vld [vmem:[%s1 + $0xc] sm:$0xf]
  %v22 = vld [vmem:[%s1 + $0x10] sm:$0xf]
  %v23 = vld [vmem:[%s1 + $0x14] sm:$0xf]
  %v24 = vld [vmem:[%s1 + $0x18] sm:$0xf]
  %v25 = vld [vmem:[%s1 + $0x1c] sm:$0xf]
  %v26 = vld [vmem:[%s1 + $0x20] sm:$0xf]
  %v27 = vld [vmem:[%s1 + $0x24] sm:$0xf]
  %v28 = vld [vmem:[%s1 + $0x28] sm:$0xf]
  %v29 = vld [vmem:[%s1 + $0x2c] sm:$0xf]
  %v30 = vld [vmem:[%s1 + $0x30] sm:$0xf]
  %v31 = vld [vmem:[%s1 + $0x34] sm:$0xf]
  %v32 = vld [vmem:[%s1 + $0x38] sm:$0xf]
  %v33 = vld [vmem:[%s1 + $0x3c] sm:$0xf]
  %v34 = vld [vmem:[%s1 + $0x40] sm:$0xf]
  %v35 = vld [vmem:[%s1 + $0x44] sm:$0xf]
  %v36 = vld [vmem:[%s1 + $0x48] sm:$0xf]
  %v37 = vld [vmem:[%s1 + $0x4c] sm:$0xf]
  %v38 = vld [vmem:[%s1 + $0x50] sm:$0xf]
  %v39 = vld [vmem:[%s1 + $0x54] sm:$0xf]
  %v40 = vld [vmem:[%s1 + $0x58] sm:$0xf]
  %v41 = vld [vmem:[%s1 + $0x5c] sm:$0xf]
  %v42 = vld [vmem:[%s1 + $0x60] sm:$0xf]
  %v43 = vld [vmem:[%s1 + $0x64] sm:$0xf]
  %v44 = vld [vmem:[%s1 + $0x68] sm:$0xf]
  %v45 = vld [vmem:[%s1 + $0x6c] sm:$0xf]
  %v46 = vld [vmem:[%s1 + $0x70] sm:$0xf]
  %v47 = vld [vmem:[%s1 + $0x74] sm:$0xf]
  %v48 = vld [vmem:[%s1 + $0x78] sm:$0xf]
  %v49 = vld [vmem:[%s1 + $0x7c] sm:$0xf]
  %v50 = vld [vmem:[%s1 + $0x80] sm:$0xf]
  %v51 = vld [vmem:[%s1 + $0x84] sm:$0xf]
  %v52 = vld [vmem:[%s1 + $0x88] sm:$0xf]
  %v53 = vld [vmem:[%s1 + $0x8c] sm:$0xf]
  %v54 = vld [vmem:[%s1 + $0x90] sm:$0xf]
  %v55 = vld [vmem:[%s1 + $0x94] sm:$0xf]
  %v56 = vld [vmem:[%s1 + $0x98] sm:$0xf]
  %v57 = vld [vmem:[%s1 + $0x9c] sm:$0xf]
  %v58 = vld [vmem:[%s1 + $0xa0] sm:$0xf]
  %v59 = vld [vmem:[%s1 + $0xa4] sm:$0xf]
  %v60 = vld [vmem:[%s1 + $0xa8] sm:$0xf]
  %v61 = vld [vmem:[%s1 + $0xac] sm:$0xf]
  %v62 = vld [vmem:[%s1 + $0xb0] sm:$0xf]
  %v63 = vld [vmem:[%s1 + $0xb4] sm:$0xf]
  %v64 = vld [vmem:[%s1 + $0xb8] sm:$0xf]
  %v65 = vld [vmem:[%s1 + $0xbc] sm:$0xf]
  %v66 = vld [vmem:[%s1 + $0xc0] sm:$0xf]
  %v67 = vld [vmem:[%s1 + $0xc4] sm:$0xf]
  %v68 = vld [vmem:[%s1 + $0xc8] sm:$0xf]
  %v69 = vld [vmem:[%s1 + $0xcc] sm:$0xf]
  %v70 = vld [vmem:[%s1 + $0xd0] sm:$0xf]
  %v71 = vld [vmem:[%s1 + $0xd4] sm:$0xf]
  %v72 = vld [vmem:[%s1 + $0xd8] sm:$0xf]
  %v73 = vld [vmem:[%s1 + $0xdc] sm:$0xf]
  %v74 = vld [vmem:[%s1 + $0xe0] sm:$0xf]
  %v75 = vld [vmem:[%s1 + $0xe4] sm:$0xf]
  %v76 = vld [vmem:[%s1 + $0xe8] sm:$0xf]
  %v77 = vld [vmem:[%s1 + $0xec] sm:$0xf]
  %v78 = vld [vmem:[%s1 + $0xf0] sm:$0xf]
  %v79 = vld [vmem:[%s1 + $0xf4] sm:$0xf]
  %v80 = vld [vmem:[%s1 + $0xf8] sm:$0xf]
  %v81 = vld [vmem:[%s1 + $0xfc] sm:$0xf]
  %v82 = vld [vmem:[%s1 + $0x100] sm:$0xf]
  %v83 = vld [vmem:[%s1 + $0x104] sm:$0xf]
  %v84 = vld [vmem:[%s1 + $0x108] sm:$0xf]
  %v85 = vld [vmem:[%s1 + $0x10c] sm:$0xf]
  %v86 = vld [vmem:[%s1 + $0x110] sm:$0xf]
  %v87 = vld [vmem:[%s1 + $0x114] sm:$0xf]
  %v88 = vld [vmem:[%s1 + $0x118] sm:$0xf]
  %v89 = vld [vmem:[%s1 + $0x11c] sm:$0xf]
  %v90 = vld [vmem:[%s2] sm:$0x1]
  %v92 = vlaneseq
  %v93 = vshrl.u32 %v92, 7
  %v94 = vsub.s32 0, %v93
  %v95 = vrot.slane %v90, %v94
  %v100 = vunpack.c.l.b16 %v15
  %v101 = vunpack.c.h.b16 %v15
  %v102 = vunpack.c.l.b16 %v16
  %v103 = vunpack.c.h.b16 %v16
  %v104 = vunpack.c.l.b16 %v17
  %v105 = vpack.c.b16 %v100, %v100
  %v106 = vpack.c.b16 %v101, %v101
  %v107 = vpack.c.b16 %v102, %v102
  %v108 = vpack.c.b16 %v103, %v103
  %v109 = vpack.c.b16 %v104, %v104
  %v186 = vunpack.c.l.b16 %v18
  %v187 = vunpack.c.l.b16 %v19
  %v188 = vunpack.c.l.b16 %v20
  %v189 = vunpack.c.l.b16 %v21
  %v190 = vunpack.c.l.b16 %v22
  %v191 = vunpack.c.l.b16 %v23
  %v192 = vunpack.c.l.b16 %v24
  %v193 = vunpack.c.l.b16 %v25
  %v194 = vunpack.c.l.b16 %v26
  %v195 = vunpack.c.l.b16 %v27
  %v196 = vunpack.c.l.b16 %v28
  %v197 = vunpack.c.l.b16 %v29
  %v198 = vunpack.c.l.b16 %v30
  %v199 = vunpack.c.l.b16 %v31
  %v200 = vunpack.c.l.b16 %v32
  %v201 = vunpack.c.l.b16 %v33
  %v202 = vunpack.c.l.b16 %v34
  %v203 = vunpack.c.l.b16 %v35
  %v204 = vunpack.c.l.b16 %v36
  %v205 = vunpack.c.l.b16 %v37
  %v206 = vunpack.c.l.b16 %v38
  %v207 = vunpack.c.l.b16 %v39
  %v208 = vunpack.c.l.b16 %v40
  %v209 = vunpack.c.l.b16 %v41
  %v210 = vunpack.c.l.b16 %v42
  %v211 = vunpack.c.l.b16 %v43
  %v212 = vunpack.c.l.b16 %v44
  %v213 = vunpack.c.l.b16 %v45
  %v214 = vunpack.c.l.b16 %v46
  %v215 = vunpack.c.l.b16 %v47
  %v216 = vunpack.c.l.b16 %v48
  %v217 = vunpack.c.l.b16 %v49
  %v218 = vunpack.c.l.b16 %v50
  %v219 = vunpack.c.l.b16 %v51
  %v220 = vunpack.c.l.b16 %v52
  %v221 = vunpack.c.l.b16 %v53
  %v222 = vunpack.c.l.b16 %v54
  %v223 = vunpack.c.l.b16 %v55
  %v224 = vunpack.c.l.b16 %v56
  %v225 = vunpack.c.l.b16 %v57
  %v226 = vunpack.c.l.b16 %v58
  %v227 = vunpack.c.l.b16 %v59
  %v228 = vunpack.c.l.b16 %v60
  %v229 = vunpack.c.l.b16 %v61
  %v230 = vunpack.c.l.b16 %v62
  %v231 = vunpack.c.l.b16 %v63
  %v232 = vunpack.c.l.b16 %v64
  %v233 = vunpack.c.l.b16 %v65
  %v234 = vunpack.c.l.b16 %v66
  %v235 = vunpack.c.l.b16 %v67
  %v236 = vunpack.c.l.b16 %v68
  %v237 = vunpack.c.l.b16 %v69
  %v238 = vunpack.c.l.b16 %v70
  %v239 = vunpack.c.l.b16 %v71
  %v240 = vunpack.c.l.b16 %v72
  %v241 = vunpack.c.l.b16 %v73
  %v242 = vunpack.c.l.b16 %v74
  %v243 = vunpack.c.l.b16 %v75
  %v244 = vunpack.c.l.b16 %v76
  %v245 = vunpack.c.l.b16 %v77
  %v246 = vunpack.c.l.b16 %v78
  %v247 = vunpack.c.l.b16 %v79
  %v248 = vunpack.c.l.b16 %v80
  %v249 = vunpack.c.l.b16 %v81
  %v250 = vunpack.c.l.b16 %v82
  %v251 = vunpack.c.l.b16 %v83
  %v252 = vunpack.c.l.b16 %v84
  %v253 = vunpack.c.l.b16 %v85
  %v254 = vunpack.c.l.b16 %v86
  %v255 = vunpack.c.l.b16 %v87
  %v256 = vunpack.c.l.b16 %v88
  %v257 = vunpack.c.l.b16 %v89
  %v258 = vpack.c.b16 %v187, %v186
  %v259 = vpack.c.b16 %v189, %v188
  %v260 = vpack.c.b16 %v191, %v190
  %v261 = vpack.c.b16 %v193, %v192
  %v262 = vpack.c.b16 %v195, %v194
  %v263 = vpack.c.b16 %v197, %v196
  %v264 = vpack.c.b16 %v199, %v198
  %v265 = vpack.c.b16 %v201, %v200
  %v266 = vpack.c.b16 %v203, %v202
  %v267 = vpack.c.b16 %v205, %v204
  %v268 = vpack.c.b16 %v207, %v206
  %v269 = vpack.c.b16 %v209, %v208
  %v270 = vpack.c.b16 %v211, %v210
  %v271 = vpack.c.b16 %v213, %v212
  %v272 = vpack.c.b16 %v215, %v214
  %v273 = vpack.c.b16 %v217, %v216
  %v274 = vpack.c.b16 %v219, %v218
  %v275 = vpack.c.b16 %v221, %v220
  %v276 = vpack.c.b16 %v223, %v222
  %v277 = vpack.c.b16 %v225, %v224
  %v278 = vpack.c.b16 %v227, %v226
  %v279 = vpack.c.b16 %v229, %v228
  %v280 = vpack.c.b16 %v231, %v230
  %v281 = vpack.c.b16 %v233, %v232
  %v282 = vpack.c.b16 %v235, %v234
  %v283 = vpack.c.b16 %v237, %v236
  %v284 = vpack.c.b16 %v239, %v238
  %v285 = vpack.c.b16 %v241, %v240
  %v286 = vpack.c.b16 %v243, %v242
  %v287 = vpack.c.b16 %v245, %v244
  %v288 = vpack.c.b16 %v247, %v246
  %v289 = vpack.c.b16 %v249, %v248
  %v290 = vpack.c.b16 %v251, %v250
  %v291 = vpack.c.b16 %v253, %v252
  %v292 = vpack.c.b16 %v255, %v254
  %v293 = vpack.c.b16 %v257, %v256
  %vm330 = vcmask 523264
  %v332 = vsel %vm330, %v109, 0
  %334 = vmatprep.subr.bf16.mxu0 0
  %335 = vmatpush1.bf16.msra.mxu0 %v258
  %336 = vmatprep.subr.bf16.mxu0 0
  %337 = vmatpush1.bf16.msra.mxu0 %v259
  %338 = vmatprep.subr.bf16.mxu0 0
  %339 = vmatpush1.bf16.msra.mxu0 %v260
  %340 = vmatprep.subr.bf16.mxu0 0
  %341 = vmatpush1.bf16.msra.mxu0 %v261
  %342 = vmatprep.subr.bf16.mxu0 0
  %343 = vmatpush1.bf16.msra.mxu0 %v262
  %344 = vmatprep.subr.bf16.mxu0 0
  %345 = vmatpush1.bf16.msra.mxu0 %v263
  %346 = vmatprep.subr.bf16.mxu0 0
  %347 = vmatpush1.bf16.msra.mxu0 %v264
  %348 = vmatprep.subr.bf16.mxu0 0
  %349 = vmatpush1.bf16.msra.mxu0 %v265
  %350 = vmatprep.subr.bf16.mxu0 0
  %351 = vmatpush1.bf16.msra.mxu0 %v266
  %352 = vmatprep.subr.bf16.mxu0 0
  %353 = vmatpush1.bf16.msra.mxu0 %v267
  %354 = vmatprep.subr.bf16.mxu0 0
  %355 = vmatpush1.bf16.msra.mxu0 %v268
  %356 = vmatprep.subr.bf16.mxu0 0
  %357 = vmatpush1.bf16.msra.mxu0 %v269
  %358 = vmatprep.subr.bf16.mxu0 0
  %359 = vmatpush1.bf16.msra.mxu0 %v270
  %360 = vmatprep.subr.bf16.mxu0 0
  %361 = vmatpush1.bf16.msra.mxu0 %v271
  %362 = vmatprep.subr.bf16.mxu0 0
  %363 = vmatpush1.bf16.msra.mxu0 %v272
  %364 = vmatprep.subr.bf16.mxu0 0
  %365 = vmatpush1.bf16.msra.mxu0 %v273
  %366 = vmatprep.mubr.bf16.mxu0 %v106
  %367 = vmatmul.mubr.bf16.gmra.mrb[0].mxu0 %v105
  %v368 = vpop.f32.mrb[0].mxu0
  %v369 = vadd.f32 %v95, %v368
  %v370 = vpop.f32.mrb[0].mxu0
  %v371 = vpop.f32.mrb[0].mxu0
  %v372 = vpop.f32.mrb[0].mxu0
  %373 = vdwg.mxu0
  %374 = vmatprep.subr.bf16.mxu0 0
  %375 = vmatpush1.bf16.msra.mxu0 %v274
  %376 = vmatprep.subr.bf16.mxu0 0
  %377 = vmatpush1.bf16.msra.mxu0 %v275
  %378 = vmatprep.subr.bf16.mxu0 0
  %379 = vmatpush1.bf16.msra.mxu0 %v276
  %380 = vmatprep.subr.bf16.mxu0 0
  %381 = vmatpush1.bf16.msra.mxu0 %v277
  %382 = vmatprep.subr.bf16.mxu0 0
  %383 = vmatpush1.bf16.msra.mxu0 %v278
  %384 = vmatprep.subr.bf16.mxu0 0
  %385 = vmatpush1.bf16.msra.mxu0 %v279
  %386 = vmatprep.subr.bf16.mxu0 0
  %387 = vmatpush1.bf16.msra.mxu0 %v280
  %388 = vmatprep.subr.bf16.mxu0 0
  %389 = vmatpush1.bf16.msra.mxu0 %v281
  %390 = vmatprep.subr.bf16.mxu0 0
  %391 = vmatpush1.bf16.msra.mxu0 %v282
  %392 = vmatprep.subr.bf16.mxu0 0
  %393 = vmatpush1.bf16.msra.mxu0 %v283
  %394 = vmatprep.subr.bf16.mxu0 0
  %395 = vmatpush1.bf16.msra.mxu0 %v284
  %396 = vmatprep.subr.bf16.mxu0 0
  %397 = vmatpush1.bf16.msra.mxu0 %v285
  %398 = vmatprep.subr.bf16.mxu0 0
  %399 = vmatpush1.bf16.msra.mxu0 %v286
  %400 = vmatprep.subr.bf16.mxu0 0
  %401 = vmatpush1.bf16.msra.mxu0 %v287
  %402 = vmatprep.subr.bf16.mxu0 0
  %403 = vmatpush1.bf16.msra.mxu0 %v288
  %404 = vmatprep.subr.bf16.mxu0 0
  %405 = vmatpush1.bf16.msra.mxu0 %v289
  %406 = vmatprep.mubr.bf16.mxu0 %v108
  %407 = vmatmul.mubr.bf16.gmra.mrb[0].mxu0 %v107
  %v408 = vpop.f32.mrb[0].mxu0
  %v409 = vadd.f32 %v369, %v408
  %v410 = vpop.f32.mrb[0].mxu0
  %v411 = vpop.f32.mrb[0].mxu0
  %v412 = vpop.f32.mrb[0].mxu0
  %413 = vdwg.mxu0
  %414 = vmatprep.subr.bf16.mxu0 0
  %415 = vmatpush1.bf16.msra.mxu0 %v290
  %416 = vmatprep.subr.bf16.mxu0 0
  %417 = vmatpush1.bf16.msra.mxu0 %v291
  %418 = vmatprep.subr.bf16.mxu0 0
  %419 = vmatpush1.bf16.msra.mxu0 %v292
  %420 = vmatprep.subr.bf16.mxu0 0
  %421 = vmatpush1.bf16.msra.mxu0 %v293
  %422 = vmatprep.subr.bf16.mxu0 0
  %423 = vmatpush1.bf16.msra.mxu0 0
  %424 = vmatprep.subr.bf16.mxu0 0
  %425 = vmatpush1.bf16.msra.mxu0 0
  %426 = vmatprep.subr.bf16.mxu0 0
  %427 = vmatpush1.bf16.msra.mxu0 0
  %428 = vmatprep.subr.bf16.mxu0 0
  %429 = vmatpush1.bf16.msra.mxu0 0
  %430 = vmatprep.subr.bf16.mxu0 0
  %431 = vmatpush1.bf16.msra.mxu0 0
  %432 = vmatprep.subr.bf16.mxu0 0
  %433 = vmatpush1.bf16.msra.mxu0 0
  %434 = vmatprep.subr.bf16.mxu0 0
  %435 = vmatpush1.bf16.msra.mxu0 0
  %436 = vmatprep.subr.bf16.mxu0 0
  %437 = vmatpush1.bf16.msra.mxu0 0
  %438 = vmatprep.subr.bf16.mxu0 0
  %439 = vmatpush1.bf16.msra.mxu0 0
  %440 = vmatprep.subr.bf16.mxu0 0
  %441 = vmatpush1.bf16.msra.mxu0 0
  %442 = vmatprep.subr.bf16.mxu0 0
  %443 = vmatpush1.bf16.msra.mxu0 0
  %444 = vmatprep.subr.bf16.mxu0 0
  %445 = vmatpush1.bf16.msra.mxu0 0
  %446 = vmatprep.mubr.bf16.mxu0 0
  %447 = vmatmul.mubr.bf16.gmra.mrb[0].mxu0 %v332
  %v448 = vpop.f32.mrb[0].mxu0
  %v449 = vadd.f32 %v409, %v448
  %v450 = vpop.f32.mrb[0].mxu0
  %v451 = vpop.f32.mrb[0].mxu0
  %v452 = vpop.f32.mrb[0].mxu0
  %453 = vdwg.mxu0
  %v454 = vmax.f32 %v449, 0.0
  %v455 = vpack.c.bf16 %v454, %v454
  %456 = vst [vmem:[%s3] sm:$0xf] %v455
  // Predicated region
  $region14: #{downsam_block_forward.2} parent=0 // pred_check
    _
  $region15: #{downsam_block_forward.2} parent=0 // pred_check_branch
    %458 = sbr.rel (0) target = $region17
  $region16: #{downsam_block_forward.2} parent=0 // pred_region
    _
  $region17: #{downsam_block_forward.2} parent=0 // pred_fallthru
    _
  // Predicated region
  $region18: #{downsam_block_forward.2} parent=0 // pred_check
    _
  $region19: #{downsam_block_forward.2} parent=0 // pred_check_branch
    %460 = sbr.rel (0) target = $region21
  $region20: #{downsam_block_forward.2} parent=0 // pred_region
    _
  $region21: #{downsam_block_forward.2} parent=0 // pred_fallthru
    _

// kernel: downsam_block_forward.3
$region0: #{downsam_block_forward.3}
  #allocation0 [shape = 'u32[]', space=smem, size = 0x4, offset = 0x4, fixed_abs, tag = 'smem constant byte address 0x4 - core index']
  #allocation1 [shape = 'u32[144,128]{1,0:T(1,128)}', space=vmem, size = 0x12000, scoped, tag = 'internal scratch']
  %s0 = inlined_call_operand.vmem [shape: bf16[8,1152], index: 0, kind: input, shape index: {}]
  %s1 = inlined_call_operand.vmem [shape: bf16[8,64], index: 1, kind: input, shape index: {}]
  %s2 = inlined_call_operand.vmem [shape: bf16[1152,128], index: 2, kind: input, shape index: {}]
  %s3 = inlined_call_operand.vmem [shape: bf16[64,128], index: 3, kind: input, shape index: {}]
  %s4 = inlined_call_operand.vmem [shape: f32[1,128], index: 4, kind: input, shape index: {}]
  %s5 = inlined_call_operand.vmem [shape: f32[8,128], index: 5, kind: output, shape index: {}]
  %s6 = sld [smem:[#allocation0]]
  $region30: #{downsam_block_forward.3} parent=0
    _
  %s8 = ssub.s32 1, %s6
  %s9 = scalar_select 0, %s8, %s6
  // Predicated region
  $region2: #{downsam_block_forward.3} parent=0 // pred_check
    _
  $region3: #{downsam_block_forward.3} parent=0 // pred_check_branch
    %11 = sbr.rel (0) target = $region5
  $region4: #{downsam_block_forward.3} parent=0 // pred_region
    _
  $region5: #{downsam_block_forward.3} parent=0 // pred_fallthru
    _
  // Predicated region
  $region6: #{downsam_block_forward.3} parent=0 // pred_check
    _
  $region7: #{downsam_block_forward.3} parent=0 // pred_check_branch
    %13 = sbr.rel (0) target = $region9
  $region8: #{downsam_block_forward.3} parent=0 // pred_region
    _
  $region9: #{downsam_block_forward.3} parent=0 // pred_fallthru
    _
  // Predicated region
  $region10: #{downsam_block_forward.3} parent=0 // pred_check
    _
  $region11: #{downsam_block_forward.3} parent=0 // pred_check_branch
    %15 = sbr.rel (0) target = $region13
  $region12: #{downsam_block_forward.3} parent=0 // pred_region
    _
  $region13: #{downsam_block_forward.3} parent=0 // pred_fallthru
    _
  // Predicated region
  $region14: #{downsam_block_forward.3} parent=0 // pred_check
    _
  $region15: #{downsam_block_forward.3} parent=0 // pred_check_branch
    %17 = sbr.rel (0) target = $region17
  $region16: #{downsam_block_forward.3} parent=0 // pred_region
    _
  $region17: #{downsam_block_forward.3} parent=0 // pred_fallthru
    _
  // Predicated region
  $region18: #{downsam_block_forward.3} parent=0 // pred_check
    _
  $region19: #{downsam_block_forward.3} parent=0 // pred_check_branch
    %19 = sbr.rel (0) target = $region21
  $region20: #{downsam_block_forward.3} parent=0 // pred_region
    _
  $region21: #{downsam_block_forward.3} parent=0 // pred_fallthru
    _
  %v21 = vld [vmem:[%s0] sm:$0xff]
  %v22 = vld [vmem:[%s0 + $0x8] sm:$0xff]
  %v23 = vld [vmem:[%s0 + $0x10] sm:$0xff]
  %v24 = vld [vmem:[%s0 + $0x18] sm:$0xff]
  %v25 = vld [vmem:[%s0 + $0x20] sm:$0xf]
  %v26 = vld [vmem:[%s2] sm:$0xf]
  %v27 = vld [vmem:[%s2 + $0x4] sm:$0xf]
  %v28 = vld [vmem:[%s2 + $0x8] sm:$0xf]
  %v29 = vld [vmem:[%s2 + $0xc] sm:$0xf]
  %v30 = vld [vmem:[%s2 + $0x10] sm:$0xf]
  %v31 = vld [vmem:[%s2 + $0x14] sm:$0xf]
  %v32 = vld [vmem:[%s2 + $0x18] sm:$0xf]
  %v33 = vld [vmem:[%s2 + $0x1c] sm:$0xf]
  %v34 = vld [vmem:[%s2 + $0x20] sm:$0xf]
  %v35 = vld [vmem:[%s2 + $0x24] sm:$0xf]
  %v36 = vld [vmem:[%s2 + $0x28] sm:$0xf]
  %v37 = vld [vmem:[%s2 + $0x2c] sm:$0xf]
  %v38 = vld [vmem:[%s2 + $0x30] sm:$0xf]
  %v39 = vld [vmem:[%s2 + $0x34] sm:$0xf]
  %v40 = vld [vmem:[%s2 + $0x38] sm:$0xf]
  %v41 = vld [vmem:[%s2 + $0x3c] sm:$0xf]
  %v42 = vld [vmem:[%s2 + $0x40] sm:$0xf]
  %v43 = vld [vmem:[%s2 + $0x44] sm:$0xf]
  %v44 = vld [vmem:[%s2 + $0x48] sm:$0xf]
  %v45 = vld [vmem:[%s2 + $0x4c] sm:$0xf]
  %v46 = vld [vmem:[%s2 + $0x50] sm:$0xf]
  %v47 = vld [vmem:[%s2 + $0x54] sm:$0xf]
  %v48 = vld [vmem:[%s2 + $0x58] sm:$0xf]
  %v49 = vld [vmem:[%s2 + $0x5c] sm:$0xf]
  %v50 = vld [vmem:[%s2 + $0x60] sm:$0xf]
  %v51 = vld [vmem:[%s2 + $0x64] sm:$0xf]
  %v52 = vld [vmem:[%s2 + $0x68] sm:$0xf]
  %v53 = vld [vmem:[%s2 + $0x6c] sm:$0xf]
  %v54 = vld [vmem:[%s2 + $0x70] sm:$0xf]
  %v55 = vld [vmem:[%s2 + $0x74] sm:$0xf]
  %v56 = vld [vmem:[%s2 + $0x78] sm:$0xf]
  %v57 = vld [vmem:[%s2 + $0x7c] sm:$0xf]
  %v58 = vld [vmem:[%s2 + $0x80] sm:$0xf]
  %v59 = vld [vmem:[%s2 + $0x84] sm:$0xf]
  %v60 = vld [vmem:[%s2 + $0x88] sm:$0xf]
  %v61 = vld [vmem:[%s2 + $0x8c] sm:$0xf]
  %v62 = vld [vmem:[%s2 + $0x90] sm:$0xf]
  %v63 = vld [vmem:[%s2 + $0x94] sm:$0xf]
  %v64 = vld [vmem:[%s2 + $0x98] sm:$0xf]
  %v65 = vld [vmem:[%s2 + $0x9c] sm:$0xf]
  %v66 = vld [vmem:[%s2 + $0xa0] sm:$0xf]
  %v67 = vld [vmem:[%s2 + $0xa4] sm:$0xf]
  %v68 = vld [vmem:[%s2 + $0xa8] sm:$0xf]
  %v69 = vld [vmem:[%s2 + $0xac] sm:$0xf]
  %v70 = vld [vmem:[%s2 + $0xb0] sm:$0xf]
  %v71 = vld [vmem:[%s2 + $0xb4] sm:$0xf]
  %v72 = vld [vmem:[%s2 + $0xb8] sm:$0xf]
  %v73 = vld [vmem:[%s2 + $0xbc] sm:$0xf]
  %v74 = vld [vmem:[%s2 + $0xc0] sm:$0xf]
  %v75 = vld [vmem:[%s2 + $0xc4] sm:$0xf]
  %v76 = vld [vmem:[%s2 + $0xc8] sm:$0xf]
  %v77 = vld [vmem:[%s2 + $0xcc] sm:$0xf]
  %v78 = vld [vmem:[%s2 + $0xd0] sm:$0xf]
  %v79 = vld [vmem:[%s2 + $0xd4] sm:$0xf]
  %v80 = vld [vmem:[%s2 + $0xd8] sm:$0xf]
  %v81 = vld [vmem:[%s2 + $0xdc] sm:$0xf]
  %v82 = vld [vmem:[%s2 + $0xe0] sm:$0xf]
  %v83 = vld [vmem:[%s2 + $0xe4] sm:$0xf]
  %v84 = vld [vmem:[%s2 + $0xe8] sm:$0xf]
  %v85 = vld [vmem:[%s2 + $0xec] sm:$0xf]
  %v86 = vld [vmem:[%s2 + $0xf0] sm:$0xf]
  %v87 = vld [vmem:[%s2 + $0xf4] sm:$0xf]
  %v88 = vld [vmem:[%s2 + $0xf8] sm:$0xf]
  %v89 = vld [vmem:[%s2 + $0xfc] sm:$0xf]
  %v90 = vld [vmem:[%s2 + $0x100] sm:$0xf]
  %v91 = vld [vmem:[%s2 + $0x104] sm:$0xf]
  %v92 = vld [vmem:[%s2 + $0x108] sm:$0xf]
  %v93 = vld [vmem:[%s2 + $0x10c] sm:$0xf]
  %v94 = vld [vmem:[%s2 + $0x110] sm:$0xf]
  %v95 = vld [vmem:[%s2 + $0x114] sm:$0xf]
  %v96 = vld [vmem:[%s2 + $0x118] sm:$0xf]
  %v97 = vld [vmem:[%s2 + $0x11c] sm:$0xf]
  %v98 = vld [vmem:[%s2 + $0x120] sm:$0xf]
  %v99 = vld [vmem:[%s2 + $0x124] sm:$0xf]
  %v100 = vld [vmem:[%s2 + $0x128] sm:$0xf]
  %v101 = vld [vmem:[%s2 + $0x12c] sm:$0xf]
  %v102 = vld [vmem:[%s2 + $0x130] sm:$0xf]
  %v103 = vld [vmem:[%s2 + $0x134] sm:$0xf]
  %v104 = vld [vmem:[%s2 + $0x138] sm:$0xf]
  %v105 = vld [vmem:[%s2 + $0x13c] sm:$0xf]
  %v106 = vld [vmem:[%s2 + $0x140] sm:$0xf]
  %v107 = vld [vmem:[%s2 + $0x144] sm:$0xf]
  %v108 = vld [vmem:[%s2 + $0x148] sm:$0xf]
  %v109 = vld [vmem:[%s2 + $0x14c] sm:$0xf]
  %v110 = vld [vmem:[%s2 + $0x150] sm:$0xf]
  %v111 = vld [vmem:[%s2 + $0x154] sm:$0xf]
  %v112 = vld [vmem:[%s2 + $0x158] sm:$0xf]
  %v113 = vld [vmem:[%s2 + $0x15c] sm:$0xf]
  %v114 = vld [vmem:[%s2 + $0x160] sm:$0xf]
  %v115 = vld [vmem:[%s2 + $0x164] sm:$0xf]
  %v116 = vld [vmem:[%s2 + $0x168] sm:$0xf]
  %v117 = vld [vmem:[%s2 + $0x16c] sm:$0xf]
  %v118 = vld [vmem:[%s2 + $0x170] sm:$0xf]
  %v119 = vld [vmem:[%s2 + $0x174] sm:$0xf]
  %v120 = vld [vmem:[%s2 + $0x178] sm:$0xf]
  %v121 = vld [vmem:[%s2 + $0x17c] sm:$0xf]
  %v122 = vld [vmem:[%s2 + $0x180] sm:$0xf]
  %v123 = vld [vmem:[%s2 + $0x184] sm:$0xf]
  %v124 = vld [vmem:[%s2 + $0x188] sm:$0xf]
  %v125 = vld [vmem:[%s2 + $0x18c] sm:$0xf]
  %v126 = vld [vmem:[%s2 + $0x190] sm:$0xf]
  %v127 = vld [vmem:[%s2 + $0x194] sm:$0xf]
  %v128 = vld [vmem:[%s2 + $0x198] sm:$0xf]
  %v129 = vld [vmem:[%s2 + $0x19c] sm:$0xf]
  %v130 = vld [vmem:[%s2 + $0x1a0] sm:$0xf]
  %v131 = vld [vmem:[%s2 + $0x1a4] sm:$0xf]
  %v132 = vld [vmem:[%s2 + $0x1a8] sm:$0xf]
  %v133 = vld [vmem:[%s2 + $0x1ac] sm:$0xf]
  %v134 = vld [vmem:[%s2 + $0x1b0] sm:$0xf]
  %v135 = vld [vmem:[%s2 + $0x1b4] sm:$0xf]
  %v136 = vld [vmem:[%s2 + $0x1b8] sm:$0xf]
  %v137 = vld [vmem:[%s2 + $0x1bc] sm:$0xf]
  %v138 = vld [vmem:[%s2 + $0x1c0] sm:$0xf]
  %v139 = vld [vmem:[%s2 + $0x1c4] sm:$0xf]
  %v140 = vld [vmem:[%s2 + $0x1c8] sm:$0xf]
  %v141 = vld [vmem:[%s2 + $0x1cc] sm:$0xf]
  %v142 = vld [vmem:[%s2 + $0x1d0] sm:$0xf]
  %v143 = vld [vmem:[%s2 + $0x1d4] sm:$0xf]
  %v144 = vld [vmem:[%s2 + $0x1d8] sm:$0xf]
  %v145 = vld [vmem:[%s2 + $0x1dc] sm:$0xf]
  %v146 = vld [vmem:[%s2 + $0x1e0] sm:$0xf]
  %v147 = vld [vmem:[%s2 + $0x1e4] sm:$0xf]
  %v148 = vld [vmem:[%s2 + $0x1e8] sm:$0xf]
  %v149 = vld [vmem:[%s2 + $0x1ec] sm:$0xf]
  %v150 = vld [vmem:[%s2 + $0x1f0] sm:$0xf]
  %v151 = vld [vmem:[%s2 + $0x1f4] sm:$0xf]
  %v152 = vld [vmem:[%s2 + $0x1f8] sm:$0xf]
  %v153 = vld [vmem:[%s2 + $0x1fc] sm:$0xf]
  %v154 = vld [vmem:[%s2 + $0x200] sm:$0xf]
  %v155 = vld [vmem:[%s2 + $0x204] sm:$0xf]
  %v156 = vld [vmem:[%s2 + $0x208] sm:$0xf]
  %v157 = vld [vmem:[%s2 + $0x20c] sm:$0xf]
  %v158 = vld [vmem:[%s2 + $0x210] sm:$0xf]
  %v159 = vld [vmem:[%s2 + $0x214] sm:$0xf]
  %v160 = vld [vmem:[%s2 + $0x218] sm:$0xf]
  %v161 = vld [vmem:[%s2 + $0x21c] sm:$0xf]
  %v162 = vld [vmem:[%s2 + $0x220] sm:$0xf]
  %v163 = vld [vmem:[%s2 + $0x224] sm:$0xf]
  %v164 = vld [vmem:[%s2 + $0x228] sm:$0xf]
  %v165 = vld [vmem:[%s2 + $0x22c] sm:$0xf]
  %v166 = vld [vmem:[%s2 + $0x230] sm:$0xf]
  %v167 = vld [vmem:[%s2 + $0x234] sm:$0xf]
  %v168 = vld [vmem:[%s2 + $0x238] sm:$0xf]
  %v169 = vld [vmem:[%s2 + $0x23c] sm:$0xf]
  %v170 = vld [vmem:[%s1] sm:$0xf]
  %v171 = vld [vmem:[%s3] sm:$0xf]
  %v172 = vld [vmem:[%s3 + $0x4] sm:$0xf]
  %v173 = vld [vmem:[%s3 + $0x8] sm:$0xf]
  %v174 = vld [vmem:[%s3 + $0xc] sm:$0xf]
  %v175 = vld [vmem:[%s3 + $0x10] sm:$0xf]
  %v176 = vld [vmem:[%s3 + $0x14] sm:$0xf]
  %v177 = vld [vmem:[%s3 + $0x18] sm:$0xf]
  %v178 = vld [vmem:[%s3 + $0x1c] sm:$0xf]
  %v187 = vunpack.c.l.b16 %v171
  %v188 = vunpack.c.l.b16 %v172
  %v189 = vunpack.c.l.b16 %v173
  %v190 = vunpack.c.l.b16 %v174
  %v191 = vunpack.c.l.b16 %v175
  %v192 = vunpack.c.l.b16 %v176
  %v193 = vunpack.c.l.b16 %v177
  %v194 = vunpack.c.l.b16 %v178
  %v195 = vpack.c.b16 %v188, %v187
  %v196 = vpack.c.b16 %v190, %v189
  %v197 = vpack.c.b16 %v192, %v191
  %v198 = vpack.c.b16 %v194, %v193
  %vm203 = vcmask 523264
  %v205 = vsel %vm203, %v170, 0
  %207 = vmatprep.subr.bf16.mxu0 0
  %208 = vmatpush1.bf16.msra.mxu0 %v195
  %209 = vmatprep.subr.bf16.mxu0 0
  %210 = vmatpush1.bf16.msra.mxu0 %v196
  %211 = vmatprep.subr.bf16.mxu0 0
  %212 = vmatpush1.bf16.msra.mxu0 %v197
  %213 = vmatprep.subr.bf16.mxu0 0
  %214 = vmatpush1.bf16.msra.mxu0 %v198
  %215 = vmatprep.subr.bf16.mxu0 0
  %216 = vmatpush1.bf16.msra.mxu0 0
  %217 = vmatprep.subr.bf16.mxu0 0
  %218 = vmatpush1.bf16.msra.mxu0 0
  %219 = vmatprep.subr.bf16.mxu0 0
  %220 = vmatpush1.bf16.msra.mxu0 0
  %221 = vmatprep.subr.bf16.mxu0 0
  %222 = vmatpush1.bf16.msra.mxu0 0
  %223 = vmatprep.subr.bf16.mxu0 0
  %224 = vmatpush1.bf16.msra.mxu0 0
  %225 = vmatprep.subr.bf16.mxu0 0
  %226 = vmatpush1.bf16.msra.mxu0 0
  %227 = vmatprep.subr.bf16.mxu0 0
  %228 = vmatpush1.bf16.msra.mxu0 0
  %229 = vmatprep.subr.bf16.mxu0 0
  %230 = vmatpush1.bf16.msra.mxu0 0
  %231 = vmatprep.subr.bf16.mxu0 0
  %232 = vmatpush1.bf16.msra.mxu0 0
  %233 = vmatprep.subr.bf16.mxu0 0
  %234 = vmatpush1.bf16.msra.mxu0 0
  %235 = vmatprep.subr.bf16.mxu0 0
  %236 = vmatpush1.bf16.msra.mxu0 0
  %237 = vmatprep.subr.bf16.mxu0 0
  %238 = vmatpush1.bf16.msra.mxu0 0
  %239 = vmatprep.mubr.bf16.mxu0 0
  %240 = vmatmul.mubr.bf16.gmra.mrb[0].mxu0 %v205
  %v241 = vpop.f32.mrb[0].mxu0
  %v242 = vadd.f32 0.0, %v241
  %v243 = vpop.f32.mrb[0].mxu0
  %v244 = vpop.f32.mrb[0].mxu0
  %v245 = vpop.f32.mrb[0].mxu0
  %246 = vdwg.mxu0
  %v252 = vunpack.c.l.b16 %v21
  %v253 = vunpack.c.h.b16 %v21
  %v254 = vunpack.c.l.b16 %v22
  %v255 = vunpack.c.h.b16 %v22
  %v256 = vunpack.c.l.b16 %v23
  %v257 = vunpack.c.h.b16 %v23
  %v258 = vunpack.c.l.b16 %v24
  %v259 = vunpack.c.h.b16 %v24
  %v260 = vunpack.c.l.b16 %v25
  %v261 = vpack.c.b16 %v252, %v252
  %v262 = vpack.c.b16 %v253, %v253
  %v263 = vpack.c.b16 %v254, %v254
  %v264 = vpack.c.b16 %v255, %v255
  %v265 = vpack.c.b16 %v256, %v256
  %v266 = vpack.c.b16 %v257, %v257
  %v267 = vpack.c.b16 %v258, %v258
  %v268 = vpack.c.b16 %v259, %v259
  %v269 = vpack.c.b16 %v260, %v260
  %v423 = vunpack.c.l.b16 %v26
  %v424 = vunpack.c.l.b16 %v27
  %v425 = vunpack.c.l.b16 %v28
  %v426 = vunpack.c.l.b16 %v29
  %v427 = vunpack.c.l.b16 %v30
  %v428 = vunpack.c.l.b16 %v31
  %v429 = vunpack.c.l.b16 %v32
  %v430 = vunpack.c.l.b16 %v33
  %v431 = vunpack.c.l.b16 %v34
  %v432 = vunpack.c.l.b16 %v35
  %v433 = vunpack.c.l.b16 %v36
  %v434 = vunpack.c.l.b16 %v37
  %v435 = vunpack.c.l.b16 %v38
  %v436 = vunpack.c.l.b16 %v39
  %v437 = vunpack.c.l.b16 %v40
  %v438 = vunpack.c.l.b16 %v41
  %v439 = vunpack.c.l.b16 %v42
  %v440 = vunpack.c.l.b16 %v43
  %v441 = vunpack.c.l.b16 %v44
  %v442 = vunpack.c.l.b16 %v45
  %v443 = vunpack.c.l.b16 %v46
  %v444 = vunpack.c.l.b16 %v47
  %v445 = vunpack.c.l.b16 %v48
  %v446 = vunpack.c.l.b16 %v49
  %v447 = vunpack.c.l.b16 %v50
  %v448 = vunpack.c.l.b16 %v51
  %v449 = vunpack.c.l.b16 %v52
  %v450 = vunpack.c.l.b16 %v53
  %v451 = vunpack.c.l.b16 %v54
  %v452 = vunpack.c.l.b16 %v55
  %v453 = vunpack.c.l.b16 %v56
  %v454 = vunpack.c.l.b16 %v57
  %v455 = vunpack.c.l.b16 %v58
  %v456 = vunpack.c.l.b16 %v59
  %v457 = vunpack.c.l.b16 %v60
  %v458 = vunpack.c.l.b16 %v61
  %v459 = vunpack.c.l.b16 %v62
  %v460 = vunpack.c.l.b16 %v63
  %v461 = vunpack.c.l.b16 %v64
  %v462 = vunpack.c.l.b16 %v65
  %v463 = vunpack.c.l.b16 %v66
  %v464 = vunpack.c.l.b16 %v67
  %v465 = vunpack.c.l.b16 %v68
  %v466 = vunpack.c.l.b16 %v69
  %v467 = vunpack.c.l.b16 %v70
  %v468 = vunpack.c.l.b16 %v71
  %v469 = vunpack.c.l.b16 %v72
  %v470 = vunpack.c.l.b16 %v73
  %v471 = vunpack.c.l.b16 %v74
  %v472 = vunpack.c.l.b16 %v75
  %v473 = vunpack.c.l.b16 %v76
  %v474 = vunpack.c.l.b16 %v77
  %v475 = vunpack.c.l.b16 %v78
  %v476 = vunpack.c.l.b16 %v79
  %v477 = vunpack.c.l.b16 %v80
  %v478 = vunpack.c.l.b16 %v81
  %v479 = vunpack.c.l.b16 %v82
  %v480 = vunpack.c.l.b16 %v83
  %v481 = vunpack.c.l.b16 %v84
  %v482 = vunpack.c.l.b16 %v85
  %v483 = vunpack.c.l.b16 %v86
  %v484 = vunpack.c.l.b16 %v87
  %v485 = vunpack.c.l.b16 %v88
  %v486 = vunpack.c.l.b16 %v89
  %v487 = vunpack.c.l.b16 %v90
  %v488 = vunpack.c.l.b16 %v91
  %v489 = vunpack.c.l.b16 %v92
  %v490 = vunpack.c.l.b16 %v93
  %v491 = vunpack.c.l.b16 %v94
  %v492 = vunpack.c.l.b16 %v95
  %v493 = vunpack.c.l.b16 %v96
  %v494 = vunpack.c.l.b16 %v97
  %v495 = vunpack.c.l.b16 %v98
  %v496 = vunpack.c.l.b16 %v99
  %v497 = vunpack.c.l.b16 %v100
  %v498 = vunpack.c.l.b16 %v101
  %v499 = vunpack.c.l.b16 %v102
  %v500 = vunpack.c.l.b16 %v103
  %v501 = vunpack.c.l.b16 %v104
  %v502 = vunpack.c.l.b16 %v105
  %v503 = vunpack.c.l.b16 %v106
  %v504 = vunpack.c.l.b16 %v107
  %v505 = vunpack.c.l.b16 %v108
  %v506 = vunpack.c.l.b16 %v109
  %v507 = vunpack.c.l.b16 %v110
  %v508 = vunpack.c.l.b16 %v111
  %v509 = vunpack.c.l.b16 %v112
  %v510 = vunpack.c.l.b16 %v113
  %v511 = vunpack.c.l.b16 %v114
  %v512 = vunpack.c.l.b16 %v115
  %v513 = vunpack.c.l.b16 %v116
  %v514 = vunpack.c.l.b16 %v117
  %v515 = vunpack.c.l.b16 %v118
  %v516 = vunpack.c.l.b16 %v119
  %v517 = vunpack.c.l.b16 %v120
  %v518 = vunpack.c.l.b16 %v121
  %v519 = vunpack.c.l.b16 %v122
  %v520 = vunpack.c.l.b16 %v123
  %v521 = vunpack.c.l.b16 %v124
  %v522 = vunpack.c.l.b16 %v125
  %v523 = vunpack.c.l.b16 %v126
  %v524 = vunpack.c.l.b16 %v127
  %v525 = vunpack.c.l.b16 %v128
  %v526 = vunpack.c.l.b16 %v129
  %v527 = vunpack.c.l.b16 %v130
  %v528 = vunpack.c.l.b16 %v131
  %v529 = vunpack.c.l.b16 %v132
  %v530 = vunpack.c.l.b16 %v133
  %v531 = vunpack.c.l.b16 %v134
  %v532 = vunpack.c.l.b16 %v135
  %v533 = vunpack.c.l.b16 %v136
  %v534 = vunpack.c.l.b16 %v137
  %v535 = vunpack.c.l.b16 %v138
  %v536 = vunpack.c.l.b16 %v139
  %v537 = vunpack.c.l.b16 %v140
  %v538 = vunpack.c.l.b16 %v141
  %v539 = vunpack.c.l.b16 %v142
  %v540 = vunpack.c.l.b16 %v143
  %v541 = vunpack.c.l.b16 %v144
  %v542 = vunpack.c.l.b16 %v145
  %v543 = vunpack.c.l.b16 %v146
  %v544 = vunpack.c.l.b16 %v147
  %v545 = vunpack.c.l.b16 %v148
  %v546 = vunpack.c.l.b16 %v149
  %v547 = vunpack.c.l.b16 %v150
  %v548 = vunpack.c.l.b16 %v151
  %v549 = vunpack.c.l.b16 %v152
  %v550 = vunpack.c.l.b16 %v153
  %v551 = vunpack.c.l.b16 %v154
  %v552 = vunpack.c.l.b16 %v155
  %v553 = vunpack.c.l.b16 %v156
  %v554 = vunpack.c.l.b16 %v157
  %v555 = vunpack.c.l.b16 %v158
  %v556 = vunpack.c.l.b16 %v159
  %v557 = vunpack.c.l.b16 %v160
  %v558 = vunpack.c.l.b16 %v161
  %v559 = vunpack.c.l.b16 %v162
  %v560 = vunpack.c.l.b16 %v163
  %v561 = vunpack.c.l.b16 %v164
  %v562 = vunpack.c.l.b16 %v165
  %v563 = vunpack.c.l.b16 %v166
  %v564 = vunpack.c.l.b16 %v167
  %v565 = vunpack.c.l.b16 %v168
  %v566 = vunpack.c.l.b16 %v169
  %v567 = vpack.c.b16 %v424, %v423
  %v568 = vpack.c.b16 %v426, %v425
  %v569 = vpack.c.b16 %v428, %v427
  %v570 = vpack.c.b16 %v430, %v429
  %v571 = vpack.c.b16 %v432, %v431
  %v572 = vpack.c.b16 %v434, %v433
  %v573 = vpack.c.b16 %v436, %v435
  %v574 = vpack.c.b16 %v438, %v437
  %v575 = vpack.c.b16 %v440, %v439
  %v576 = vpack.c.b16 %v442, %v441
  %v577 = vpack.c.b16 %v444, %v443
  %v578 = vpack.c.b16 %v446, %v445
  %v579 = vpack.c.b16 %v448, %v447
  %v580 = vpack.c.b16 %v450, %v449
  %v581 = vpack.c.b16 %v452, %v451
  %v582 = vpack.c.b16 %v454, %v453
  %v583 = vpack.c.b16 %v456, %v455
  %v584 = vpack.c.b16 %v458, %v457
  %v585 = vpack.c.b16 %v460, %v459
  %v586 = vpack.c.b16 %v462, %v461
  %v587 = vpack.c.b16 %v464, %v463
  %v588 = vpack.c.b16 %v466, %v465
  %v589 = vpack.c.b16 %v468, %v467
  %v590 = vpack.c.b16 %v470, %v469
  %v591 = vpack.c.b16 %v472, %v471
  %v592 = vpack.c.b16 %v474, %v473
  %v593 = vpack.c.b16 %v476, %v475
  %v594 = vpack.c.b16 %v478, %v477
  %v595 = vpack.c.b16 %v480, %v479
  %v596 = vpack.c.b16 %v482, %v481
  %v597 = vpack.c.b16 %v484, %v483
  %v598 = vpack.c.b16 %v486, %v485
  %v599 = vpack.c.b16 %v488, %v487
  %v600 = vpack.c.b16 %v490, %v489
  %v601 = vpack.c.b16 %v492, %v491
  %v602 = vpack.c.b16 %v494, %v493
  %v603 = vpack.c.b16 %v496, %v495
  %v604 = vpack.c.b16 %v498, %v497
  %v605 = vpack.c.b16 %v500, %v499
  %v606 = vpack.c.b16 %v502, %v501
  %v607 = vpack.c.b16 %v504, %v503
  %v608 = vpack.c.b16 %v506, %v505
  %v609 = vpack.c.b16 %v508, %v507
  %v610 = vpack.c.b16 %v510, %v509
  %v611 = vpack.c.b16 %v512, %v511
  %v612 = vpack.c.b16 %v514, %v513
  %v613 = vpack.c.b16 %v516, %v515
  %v614 = vpack.c.b16 %v518, %v517
  %v615 = vpack.c.b16 %v520, %v519
  %v616 = vpack.c.b16 %v522, %v521
  %v617 = vpack.c.b16 %v524, %v523
  %v618 = vpack.c.b16 %v526, %v525
  %v619 = vpack.c.b16 %v528, %v527
  %v620 = vpack.c.b16 %v530, %v529
  %v621 = vpack.c.b16 %v532, %v531
  %v622 = vpack.c.b16 %v534, %v533
  %v623 = vpack.c.b16 %v536, %v535
  %v624 = vpack.c.b16 %v538, %v537
  %v625 = vpack.c.b16 %v540, %v539
  %v626 = vpack.c.b16 %v542, %v541
  %v627 = vpack.c.b16 %v544, %v543
  %v628 = vpack.c.b16 %v546, %v545
  %v629 = vpack.c.b16 %v548, %v547
  %v630 = vpack.c.b16 %v550, %v549
  %v631 = vpack.c.b16 %v552, %v551
  %v632 = vpack.c.b16 %v554, %v553
  %v633 = vpack.c.b16 %v556, %v555
  %v634 = vpack.c.b16 %v558, %v557
  %v635 = vpack.c.b16 %v560, %v559
  %v636 = vpack.c.b16 %v562, %v561
  %v637 = vpack.c.b16 %v564, %v563
  %v638 = vpack.c.b16 %v566, %v565
  %711 = vmatprep.subr.bf16.mxu0 0
  %712 = vmatpush1.bf16.msra.mxu0 %v567
  %713 = vmatprep.subr.bf16.mxu0 0
  %714 = vmatpush1.bf16.msra.mxu0 %v568
  %715 = vmatprep.subr.bf16.mxu0 0
  %716 = vmatpush1.bf16.msra.mxu0 %v569
  %717 = vmatprep.subr.bf16.mxu0 0
  %718 = vmatpush1.bf16.msra.mxu0 %v570
  %719 = vmatprep.subr.bf16.mxu0 0
  %720 = vmatpush1.bf16.msra.mxu0 %v571
  %721 = vmatprep.subr.bf16.mxu0 0
  %722 = vmatpush1.bf16.msra.mxu0 %v572
  %723 = vmatprep.subr.bf16.mxu0 0
  %724 = vmatpush1.bf16.msra.mxu0 %v573
  %725 = vmatprep.subr.bf16.mxu0 0
  %726 = vmatpush1.bf16.msra.mxu0 %v574
  %727 = vmatprep.subr.bf16.mxu0 0
  %728 = vmatpush1.bf16.msra.mxu0 %v575
  %729 = vmatprep.subr.bf16.mxu0 0
  %730 = vmatpush1.bf16.msra.mxu0 %v576
  %731 = vmatprep.subr.bf16.mxu0 0
  %732 = vmatpush1.bf16.msra.mxu0 %v577
  %733 = vmatprep.subr.bf16.mxu0 0
  %734 = vmatpush1.bf16.msra.mxu0 %v578
  %735 = vmatprep.subr.bf16.mxu0 0
  %736 = vmatpush1.bf16.msra.mxu0 %v579
  %737 = vmatprep.subr.bf16.mxu0 0
  %738 = vmatpush1.bf16.msra.mxu0 %v580
  %739 = vmatprep.subr.bf16.mxu0 0
  %740 = vmatpush1.bf16.msra.mxu0 %v581
  %741 = vmatprep.subr.bf16.mxu0 0
  %742 = vmatpush1.bf16.msra.mxu0 %v582
  %743 = vmatprep.mubr.bf16.mxu0 %v262
  %744 = vmatmul.mubr.bf16.gmra.mrb[0].mxu0 %v261
  %v745 = vpop.f32.mrb[0].mxu0
  %v746 = vadd.f32 %v242, %v745
  %v747 = vpop.f32.mrb[0].mxu0
  %v748 = vpop.f32.mrb[0].mxu0
  %v749 = vpop.f32.mrb[0].mxu0
  %750 = vdwg.mxu0
  %751 = vmatprep.subr.bf16.mxu0 0
  %752 = vmatpush1.bf16.msra.mxu0 %v583
  %753 = vmatprep.subr.bf16.mxu0 0
  %754 = vmatpush1.bf16.msra.mxu0 %v584
  %755 = vmatprep.subr.bf16.mxu0 0
  %756 = vmatpush1.bf16.msra.mxu0 %v585
  %757 = vmatprep.subr.bf16.mxu0 0
  %758 = vmatpush1.bf16.msra.mxu0 %v586
  %759 = vmatprep.subr.bf16.mxu0 0
  %760 = vmatpush1.bf16.msra.mxu0 %v587
  %761 = vmatprep.subr.bf16.mxu0 0
  %762 = vmatpush1.bf16.msra.mxu0 %v588
  %763 = vmatprep.subr.bf16.mxu0 0
  %764 = vmatpush1.bf16.msra.mxu0 %v589
  %765 = vmatprep.subr.bf16.mxu0 0
  %766 = vmatpush1.bf16.msra.mxu0 %v590
  %767 = vmatprep.subr.bf16.mxu0 0
  %768 = vmatpush1.bf16.msra.mxu0 %v591
  %769 = vmatprep.subr.bf16.mxu0 0
  %770 = vmatpush1.bf16.msra.mxu0 %v592
  %771 = vmatprep.subr.bf16.mxu0 0
  %772 = vmatpush1.bf16.msra.mxu0 %v593
  %773 = vmatprep.subr.bf16.mxu0 0
  %774 = vmatpush1.bf16.msra.mxu0 %v594
  %775 = vmatprep.subr.bf16.mxu0 0
  %776 = vmatpush1.bf16.msra.mxu0 %v595
  %777 = vmatprep.subr.bf16.mxu0 0
  %778 = vmatpush1.bf16.msra.mxu0 %v596
  %779 = vmatprep.subr.bf16.mxu0 0
  %780 = vmatpush1.bf16.msra.mxu0 %v597
  %781 = vmatprep.subr.bf16.mxu0 0
  %782 = vmatpush1.bf16.msra.mxu0 %v598
  %783 = vmatprep.mubr.bf16.mxu0 %v264
  %784 = vmatmul.mubr.bf16.gmra.mrb[0].mxu0 %v263
  %v785 = vpop.f32.mrb[0].mxu0
  %v786 = vadd.f32 %v746, %v785
  %v787 = vpop.f32.mrb[0].mxu0
  %v788 = vpop.f32.mrb[0].mxu0
  %v789 = vpop.f32.mrb[0].mxu0
  %790 = vdwg.mxu0
  %791 = vmatprep.subr.bf16.mxu0 0
  %792 = vmatpush1.bf16.msra.mxu0 %v599
  %793 = vmatprep.subr.bf16.mxu0 0
  %794 = vmatpush1.bf16.msra.mxu0 %v600
  %795 = vmatprep.subr.bf16.mxu0 0
  %796 = vmatpush1.bf16.msra.mxu0 %v601
  %797 = vmatprep.subr.bf16.mxu0 0
  %798 = vmatpush1.bf16.msra.mxu0 %v602
  %799 = vmatprep.subr.bf16.mxu0 0
  %800 = vmatpush1.bf16.msra.mxu0 %v603
  %801 = vmatprep.subr.bf16.mxu0 0
  %802 = vmatpush1.bf16.msra.mxu0 %v604
  %803 = vmatprep.subr.bf16.mxu0 0
  %804 = vmatpush1.bf16.msra.mxu0 %v605
  %805 = vmatprep.subr.bf16.mxu0 0
  %806 = vmatpush1.bf16.msra.mxu0 %v606
  %807 = vmatprep.subr.bf16.mxu0 0
  %808 = vmatpush1.bf16.msra.mxu0 %v607
  %809 = vmatprep.subr.bf16.mxu0 0
  %810 = vmatpush1.bf16.msra.mxu0 %v608
  %811 = vmatprep.subr.bf16.mxu0 0
  %812 = vmatpush1.bf16.msra.mxu0 %v609
  %813 = vmatprep.subr.bf16.mxu0 0
  %814 = vmatpush1.bf16.msra.mxu0 %v610
  %815 = vmatprep.subr.bf16.mxu0 0
  %816 = vmatpush1.bf16.msra.mxu0 %v611
  %817 = vmatprep.subr.bf16.mxu0 0
  %818 = vmatpush1.bf16.msra.mxu0 %v612
  %819 = vmatprep.subr.bf16.mxu0 0
  %820 = vmatpush1.bf16.msra.mxu0 %v613
  %821 = vmatprep.subr.bf16.mxu0 0
  %822 = vmatpush1.bf16.msra.mxu0 %v614
  %823 = vmatprep.mubr.bf16.mxu0 %v266
  %824 = vmatmul.mubr.bf16.gmra.mrb[0].mxu0 %v265
  %v825 = vpop.f32.mrb[0].mxu0
  %v826 = vadd.f32 %v786, %v825
  %v827 = vpop.f32.mrb[0].mxu0
  %v828 = vpop.f32.mrb[0].mxu0
  %v829 = vpop.f32.mrb[0].mxu0
  %830 = vdwg.mxu0
  %831 = vmatprep.subr.bf16.mxu0 0
  %832 = vmatpush1.bf16.msra.mxu0 %v615
  %833 = vmatprep.subr.bf16.mxu0 0
  %834 = vmatpush1.bf16.msra.mxu0 %v616
  %835 = vmatprep.subr.bf16.mxu0 0
  %836 = vmatpush1.bf16.msra.mxu0 %v617
  %837 = vmatprep.subr.bf16.mxu0 0
  %838 = vmatpush1.bf16.msra.mxu0 %v618
  %839 = vmatprep.subr.bf16.mxu0 0
  %840 = vmatpush1.bf16.msra.mxu0 %v619
  %841 = vmatprep.subr.bf16.mxu0 0
  %842 = vmatpush1.bf16.msra.mxu0 %v620
  %843 = vmatprep.subr.bf16.mxu0 0
  %844 = vmatpush1.bf16.msra.mxu0 %v621
  %845 = vmatprep.subr.bf16.mxu0 0
  %846 = vmatpush1.bf16.msra.mxu0 %v622
  %847 = vmatprep.subr.bf16.mxu0 0
  %848 = vmatpush1.bf16.msra.mxu0 %v623
  %849 = vmatprep.subr.bf16.mxu0 0
  %850 = vmatpush1.bf16.msra.mxu0 %v624
  %851 = vmatprep.subr.bf16.mxu0 0
  %852 = vmatpush1.bf16.msra.mxu0 %v625
  %853 = vmatprep.subr.bf16.mxu0 0
  %854 = vmatpush1.bf16.msra.mxu0 %v626
  %855 = vmatprep.subr.bf16.mxu0 0
  %856 = vmatpush1.bf16.msra.mxu0 %v627
  %857 = vmatprep.subr.bf16.mxu0 0
  %858 = vmatpush1.bf16.msra.mxu0 %v628
  %859 = vmatprep.subr.bf16.mxu0 0
  %860 = vmatpush1.bf16.msra.mxu0 %v629
  %861 = vmatprep.subr.bf16.mxu0 0
  %862 = vmatpush1.bf16.msra.mxu0 %v630
  %863 = vmatprep.mubr.bf16.mxu0 %v268
  %864 = vmatmul.mubr.bf16.gmra.mrb[0].mxu0 %v267
  %v865 = vpop.f32.mrb[0].mxu0
  %v866 = vadd.f32 %v826, %v865
  %v867 = vpop.f32.mrb[0].mxu0
  %v868 = vpop.f32.mrb[0].mxu0
  %v869 = vpop.f32.mrb[0].mxu0
  %870 = vdwg.mxu0
  %871 = vmatprep.subr.bf16.mxu0 0
  %872 = vmatpush1.bf16.msra.mxu0 %v631
  %873 = vmatprep.subr.bf16.mxu0 0
  %874 = vmatpush1.bf16.msra.mxu0 %v632
  %875 = vmatprep.subr.bf16.mxu0 0
  %876 = vmatpush1.bf16.msra.mxu0 %v633
  %877 = vmatprep.subr.bf16.mxu0 0
  %878 = vmatpush1.bf16.msra.mxu0 %v634
  %879 = vmatprep.subr.bf16.mxu0 0
  %880 = vmatpush1.bf16.msra.mxu0 %v635
  %881 = vmatprep.subr.bf16.mxu0 0
  %882 = vmatpush1.bf16.msra.mxu0 %v636
  %883 = vmatprep.subr.bf16.mxu0 0
  %884 = vmatpush1.bf16.msra.mxu0 %v637
  %885 = vmatprep.subr.bf16.mxu0 0
  %886 = vmatpush1.bf16.msra.mxu0 %v638
  %887 = vmatprep.subr.bf16.mxu0 0
  %888 = vmatpush1.bf16.msra.mxu0 0
  %889 = vmatprep.subr.bf16.mxu0 0
  %890 = vmatpush1.bf16.msra.mxu0 0
  %891 = vmatprep.subr.bf16.mxu0 0
  %892 = vmatpush1.bf16.msra.mxu0 0
  %893 = vmatprep.subr.bf16.mxu0 0
  %894 = vmatpush1.bf16.msra.mxu0 0
  %895 = vmatprep.subr.bf16.mxu0 0
  %896 = vmatpush1.bf16.msra.mxu0 0
  %897 = vmatprep.subr.bf16.mxu0 0
  %898 = vmatpush1.bf16.msra.mxu0 0
  %899 = vmatprep.subr.bf16.mxu0 0
  %900 = vmatpush1.bf16.msra.mxu0 0
  %901 = vmatprep.subr.bf16.mxu0 0
  %902 = vmatpush1.bf16.msra.mxu0 0
  %903 = vmatprep.mubr.bf16.mxu0 0
  %904 = vmatmul.mubr.bf16.gmra.mrb[0].mxu0 %v269
  %v905 = vpop.f32.mrb[0].mxu0
  %v906 = vadd.f32 %v866, %v905
  %v907 = vpop.f32.mrb[0].mxu0
  %v908 = vpop.f32.mrb[0].mxu0
  %v909 = vpop.f32.mrb[0].mxu0
  %910 = vdwg.mxu0
  %v911 = vld [vmem:[%s4] sm:$0x1]
  %v913 = vlaneseq
  %v914 = vshrl.u32 %v913, 7
  %v915 = vsub.s32 0, %v914
  %v916 = vrot.slane %v911, %v915
  %v918 = vadd.f32 %v906, %v916
  %v919 = vmax.f32 %v918, 0.0
  %920 = vst [vmem:[%s5] sm:$0xff] %v919
  // Predicated region
  $region22: #{downsam_block_forward.3} parent=0 // pred_check
    _
  $region23: #{downsam_block_forward.3} parent=0 // pred_check_branch
    %922 = sbr.rel (0) target = $region25
  $region24: #{downsam_block_forward.3} parent=0 // pred_region
    _
  $region25: #{downsam_block_forward.3} parent=0 // pred_fallthru
    _
  // Predicated region
  $region26: #{downsam_block_forward.3} parent=0 // pred_check
    _
  $region27: #{downsam_block_forward.3} parent=0 // pred_check_branch
    %924 = sbr.rel (0) target = $region29
  $region28: #{downsam_block_forward.3} parent=0 // pred_region
    _
  $region29: #{downsam_block_forward.3} parent=0 // pred_fallthru
    _

</llo_original>
